<compile_context>
chip_gen: v7x
topology: tpu7x:2x2x1
jax: 0.10.0
libtpu: 0.0.40
codegen_flags: <defaults>
</compile_context>

<pallas_src>
import math

import jax
import jax.numpy as jnp
from jax.experimental import pallas as pl
from jax.experimental.pallas import tpu as pltpu


def _layer_scale_kernel(x_ref, gamma_ref, o_ref):
    # (TM, W) * (1, W) broadcast multiply on the VPU; explicit cast so bf16/
    # fp16 outputs lower cleanly even if the multiply promotes to f32.
    o_ref[...] = (x_ref[...] * gamma_ref[...]).astype(o_ref.dtype)


def _vmem_capacity_bytes():
    """Best-effort VMEM capacity query; conservative (v7x-sized) fallback."""
    try:
        info = pltpu.get_tpu_info()
        for attr in ("vmem_capacity_bytes", "vmem_bytes", "vmem_size_bytes"):
            v = getattr(info, attr, None)
            if v:
                return int(v)
    except Exception:
        pass
    return 64 * 1024 * 1024  # v7x-sized fallback; masks misconfiguration but safe


def _fold_base(dim):
    """Smallest row-fold so that base*dim is a multiple of 128 lanes."""
    return 1 if dim % 128 == 0 else 128 // math.gcd(dim, 128)


def _choose_fold(M, dim):
    """Rows folded into the lane axis (M must be divisible by the fold base)."""
    r = _fold_base(dim)
    # Widen toward ~2048 lanes per folded row for denser stores / fewer rows.
    while M % (r * 2) == 0 and r * dim < 2048:
        r *= 2
    return r


def _choose_tm(R, row_bytes, pack, per_tile_budget):
    """Row-tile height: VMEM-budgeted, but with >= ~8 grid steps when possible."""
    if R <= pack:
        return R  # tiny input: single full block (block dims == array dims)
    # Cap from the per-tile VMEM budget.
    tm_cap = max(pack, (per_tile_budget // max(1, row_bytes)) // pack * pack)
    # Target >= 8 grid steps (2 x pipeline depth x 2 TensorCores on v7x) ...
    target_steps = 8
    tm_target = -(-R // target_steps)
    tm_target = -(-tm_target // pack) * pack
    # ... as long as each tile stays >= ~1 MiB.
    min_tile_rows = max(pack, ((1 << 20) // max(1, row_bytes)) // pack * pack)
    tm = min(tm_cap, max(tm_target, min_tile_rows))
    tm = min(tm, -(-R // pack) * pack)  # never (much) larger than R
    return max(pack, tm)


def _is_concrete_array(a):
    try:
        return not isinstance(a, jax.core.Tracer)
    except Exception:  # pragma: no cover
        return False


def _layer_scale_2d(x2, gamma, *, inplace=False, gamma_cache=None):
    """x2: (M, dim); gamma: (dim,) already in x2.dtype. Returns (M, dim)."""
    M, dim = x2.shape
    itemsize = jnp.dtype(x2.dtype).itemsize
    base = _fold_base(dim)

    if M % base != 0:
        # Keep the lane-dense fast path for the divisible prefix; handle the
        # tiny (<base rows) remainder with a plain JAX broadcast multiply.
        main = (M // base) * base
        if main == 0:
            return x2 * gamma[None, :]
        head = _layer_scale_2d(x2[:main], gamma, inplace=inplace,
                               gamma_cache=gamma_cache)
        tail = x2[main:] * gamma[None, :]
        return jnp.concatenate([head, tail], axis=0)

    # ---- lane-dense layout: fold rows into the lane axis --------------------
    r = _choose_fold(M, dim)
    R, W = M // r, r * dim
    xf = x2.reshape(R, W)

    cache_key = (r, str(gamma.dtype))
    gamma2 = None
    if gamma_cache is not None:
        gamma2 = gamma_cache.get(cache_key)
    if gamma2 is None:
        gamma2 = (jnp.tile(gamma, r) if r > 1 else gamma).reshape(1, W)
        if gamma_cache is not None and _is_concrete_array(gamma):
            gamma_cache[cache_key] = gamma2

    # ---- generation-aware tiling ---------------------------------------------
    pack = max(8, 32 // itemsize)             # sublane pack: 8 f32 / 16 bf16 / 32 i8
    vmem_cap = _vmem_capacity_bytes()
    vmem_limit = min(vmem_cap * 3 // 4, 96 * 1024 * 1024)   # 48 MiB v7x, 96 MiB v5e/v6e
    per_tile_budget = min(vmem_limit // 6, 16 * 1024 * 1024)  # ~8 MiB v7x, ~16 MiB v5e/v6e
    row_bytes = W * itemsize
    tm = _choose_tm(R, row_bytes, pack, per_tile_budget)
    grid = (pl.cdiv(R, tm),)   # partial last block handled (masked) by Pallas

    cost = pl.CostEstimate(
        flops=R * W,                                   # one multiply per element
        transcendentals=0,
        bytes_accessed=2 * R * W * itemsize + W * itemsize,
    )

    call_kwargs = dict(
        out_shape=jax.ShapeDtypeStruct((R, W), x2.dtype),
        grid_spec=pltpu.PrefetchScalarGridSpec(
            num_scalar_prefetch=0,
            grid=grid,
            in_specs=[
                pl.BlockSpec((tm, W), lambda i: (i, 0)),
                pl.BlockSpec((1, W), lambda i: (0, 0)),    # gamma stays resident
            ],
            out_specs=pl.BlockSpec((tm, W), lambda i: (i, 0)),
        ),
        compiler_params=pltpu.CompilerParams(
            dimension_semantics=("parallel",),             # shards rows across TCs on v7x
            vmem_limit_bytes=vmem_limit,
        ),
        cost_estimate=cost,
    )
    if inplace:
        # Honors inplace=True as buffer reuse (JAX is functional; semantics are
        # identical, HBM traffic is still one read + one write).
        call_kwargs["input_output_aliases"] = {0: 0}

    out = pl.pallas_call(_layer_scale_kernel, **call_kwargs)(xf, gamma2)
    return out.reshape(M, dim)


def layer_scale(x, gamma, *, inplace=False, gamma_cache=None):
    """y = x * gamma (gamma broadcast along the last axis)."""
    orig_shape = x.shape
    dim = orig_shape[-1]
    assert gamma.shape == (dim,), f"gamma shape {gamma.shape} != ({dim},)"
    gamma = gamma.astype(x.dtype)
    x2 = x.reshape(-1, dim)
    out2 = _layer_scale_2d(x2, gamma, inplace=inplace, gamma_cache=gamma_cache)
    return out2.reshape(orig_shape)


class LayerScale:
    """JAX/Pallas port of the PyTorch LayerScale module."""

    def __init__(self, dim, init_values=1e-05, inplace=False, dtype=jnp.float32):
        self.dim = dim
        # TODO(synk): true in-place mutation has no JAX equivalent; emulated via
        # input_output_aliases (result is numerically identical).
        self.inplace = inplace
        # Matches nn.Parameter(init_values * torch.ones(dim)).
        self.gamma = init_values * jnp.ones((dim,), dtype=dtype)
        self._gamma_cache = {}  # (fold r, dtype str) -> lane-dense tiled gamma

    def __call__(self, x):
        return layer_scale(x, self.gamma, inplace=self.inplace,
                           gamma_cache=self._gamma_cache)


if __name__ == "__main__":
    key = jax.random.PRNGKey(0)
    k1, k2 = jax.random.split(key)

    # Primary small test: batch=2, seq=8, hidden=32 (folded lane-dense path).
    x1 = jax.random.normal(k1, (2, 8, 32), dtype=jnp.float32)
    m1 = LayerScale(32, init_values=1e-05)
    y1 = jax.block_until_ready(m1(x1))
    assert y1.shape == x1.shape
    assert jnp.allclose(y1, x1 * m1.gamma.astype(x1.dtype), atol=1e-6, rtol=1e-6)

    # Second test: M not divisible by the fold base (exercises the tail path)
    # and inplace=True (input_output_aliases).
    x2 = jax.random.normal(k2, (2, 9, 48), dtype=jnp.float32)
    m2 = LayerScale(48, init_values=2e-3, inplace=True)
    y2 = jax.block_until_ready(m2(x2))
    assert y2.shape == x2.shape
    assert jnp.allclose(y2, x2 * m2.gamma.astype(x2.dtype), atol=1e-6, rtol=1e-6)

    print("KERNEL_OK")
</pallas_src>

<mosaic_0001>
module attributes {stable_mosaic.version = 11 : i64} {
  func.func @_layer_scale_kernel(%arg0: i32, %arg1: memref<1x512xf32, #tpu.memory_space<vmem>>, %arg2: memref<1x512xf32, #tpu.memory_space<vmem>>, %arg3: memref<1x512xf32, #tpu.memory_space<vmem>>) attributes {dimension_semantics = [#tpu.dimension_semantics<parallel>], iteration_bounds = array<i64: 1>, scalar_prefetch = 0 : i64, scratch_operands = 0 : i64, tpu.core_type = #tpu.core_type<tc>, window_params = [{transform_indices = @transform_0, window_bounds = array<i64: 1, 512>}, {pipeline_mode = #tpu.pipeline_mode<synchronous>, transform_indices = @transform_1, window_bounds = array<i64: 1, 512>}, {transform_indices = @transform_2, window_bounds = array<i64: 1, 512>}]} {
    %c0 = arith.constant 0 : index
    %c0_0 = arith.constant 0 : index
    %0 = vector.load %arg1[%c0, %c0_0] : memref<1x512xf32, #tpu.memory_space<vmem>>, vector<1x512xf32>
    %c0_1 = arith.constant 0 : index
    %c0_2 = arith.constant 0 : index
    %1 = vector.load %arg2[%c0_1, %c0_2] : memref<1x512xf32, #tpu.memory_space<vmem>>, vector<1x512xf32>
    %2 = arith.mulf %0, %1 : vector<1x512xf32>
    %c0_3 = arith.constant 0 : index
    %c0_4 = arith.constant 0 : index
    %3 = vector.load %arg3[%c0_3, %c0_4] : memref<1x512xf32, #tpu.memory_space<vmem>>, vector<1x512xf32>
    tpu.vector_store %arg3[%c0_3, %c0_4], %2 {strides = array<i32>} : memref<1x512xf32, #tpu.memory_space<vmem>>, vector<1x512xf32>,
    return
  }
  func.func @transform_0(%arg0: i32) -> (i32, i32) {
    %c0_i32 = arith.constant 0 : i32
    %c0_i32_0 = arith.constant 0 : i32
    return %arg0, %c0_i32 : i32, i32
  }
  func.func @transform_1(%arg0: i32) -> (i32, i32) {
    %c0_i32 = arith.constant 0 : i32
    %c0_i32_0 = arith.constant 0 : i32
    %c0_i32_1 = arith.constant 0 : i32
    return %c0_i32, %c0_i32_0 : i32, i32
  }
  func.func @transform_2(%arg0: i32) -> (i32, i32) {
    %c0_i32 = arith.constant 0 : i32
    %c0_i32_0 = arith.constant 0 : i32
    return %arg0, %c0_i32 : i32, i32
  }
}

</mosaic_0001>

<llo_original>
// kernel: tpu_custom_call.1
$region0: #{tpu_custom_call.1}
  #allocation0 [shape = 'u32[]', space=smem, size = 0x4, offset = 0x4, fixed_abs, tag = 'smem constant byte address 0x4 - core index']
  #allocation1 [shape = 'u32[144,128]{1,0:T(1,128)}', space=vmem, size = 0x12000, scoped, tag = 'internal scratch']
  %s0 = inlined_call_operand.hbm [shape: f32[1,512], index: 0, kind: input, shape index: {}]
  %s1 = inlined_call_operand.hbm [shape: f32[1,512], index: 1, kind: input, shape index: {}]
  %s2 = inlined_call_operand.hbm [shape: f32[1,512], index: 2, kind: output, shape index: {}]
  %s3 = sld [smem:[#allocation0]]
  $region26: #{tpu_custom_call.1} parent=0
    _
  %s5 = ssub.s32 1, %s3
  %s6 = scalar_select 0, %s5, %s3
  $region1: #{tpu_custom_call.1} parent=0
    #allocation2 [shape = 'u8[2048]{0}', space=vmem, size = 0x800, scoped, tag = 'input window, operand 0, single buffered']
    #allocation3 [shape = 's32[1]{0}', space=sflag, size = 0x4, scoped, tag = 'scoped memory for tpu_custom_call.1']
    #allocation4 [shape = 's32[1]{0}', space=sflag, size = 0x4, scoped, tag = 'scoped memory for tpu_custom_call.1']
    #allocation5 [shape = 'u8[2048]{0}', space=vmem, size = 0x800, scoped, tag = 'input window, operand 1, single buffered']
    #allocation6 [shape = 's32[1]{0}', space=sflag, size = 0x4, scoped, tag = 'scoped memory for tpu_custom_call.1']
    #allocation7 [shape = 'u8[2048]{0}', space=vmem, size = 0x800, scoped, tag = 'output window, operand 0, single buffered']
    %7 = vsyncpa [#allocation3], 0
    %8 = vsyncpa [#allocation6], 0
    %9 = vsyncpa [#allocation4], 0
    // Predicated region
    $region2: #{tpu_custom_call.1} parent=1 // pred_check
      _
    $region3: #{tpu_custom_call.1} parent=1 // pred_check_branch
      %11 = sbr.rel (0) target = $region5
    $region4: #{tpu_custom_call.1} parent=1 // pred_region
      %s13 = ssub.s32 64, 64
      %14 = vsyncadd [#allocation3], %s13
      %s16 = sshll.u32 [#allocation2], 4
      %s17 = int_to_ptr.vmem [resolvable:$true] %s16
      %19 = dma.hbm_to_vmem [thread:$0]  %s0, 64, %s17, [#allocation3]
    $region5: #{tpu_custom_call.1} parent=1 // pred_fallthru
      _
    // Predicated region
    $region6: #{tpu_custom_call.1} parent=1 // pred_check
      _
    $region7: #{tpu_custom_call.1} parent=1 // pred_check_branch
      %21 = sbr.rel (0) target = $region9
    $region8: #{tpu_custom_call.1} parent=1 // pred_region
      %s23 = ssub.s32 64, 64
      %24 = vsyncadd [#allocation6], %s23
      %s26 = sshll.u32 [#allocation5], 4
      %s27 = int_to_ptr.vmem [resolvable:$true] %s26
      %29 = dma.hbm_to_vmem [thread:$0]  %s1, 64, %s27, [#allocation6]
    $region9: #{tpu_custom_call.1} parent=1 // pred_fallthru
      _
    // Predicated region
    $region10: #{tpu_custom_call.1} parent=1 // pred_check
      _
    $region11: #{tpu_custom_call.1} parent=1 // pred_check_branch
      %31 = sbr.rel (0) target = $region13
    $region12: #{tpu_custom_call.1} parent=1 // pred_region
      %32 = dma.done [#allocation3], 64
    $region13: #{tpu_custom_call.1} parent=1 // pred_fallthru
      _
    // Predicated region
    $region14: #{tpu_custom_call.1} parent=1 // pred_check
      _
    $region15: #{tpu_custom_call.1} parent=1 // pred_check_branch
      %34 = sbr.rel (0) target = $region17
    $region16: #{tpu_custom_call.1} parent=1 // pred_region
      %35 = dma.done [#allocation6], 64
    $region17: #{tpu_custom_call.1} parent=1 // pred_fallthru
      _
    %v36 = vld [vmem:[#allocation2] sm:$0xf]
    %v37 = vld [vmem:[#allocation5] sm:$0xf]
    %v38 = vmul.f32 %v36, %v37
    %v39 = vlaneseq
    %vm40 = vcmp.ge.s32.totalorder %v39, 0
    %vm41 = vcmp.lt.s32.totalorder %v39, 512
    %vm42 = vmand %vm40, %vm41
    %43 = vst.msk [vmem:[#allocation7] sm:$0xf] %vm42, %v38
    // Predicated region
    $region18: #{tpu_custom_call.1} parent=1 // pred_check
      _
    $region19: #{tpu_custom_call.1} parent=1 // pred_check_branch
      %45 = sbr.rel (0) target = $region21
    $region20: #{tpu_custom_call.1} parent=1 // pred_region
      %s47 = ssub.s32 64, 64
      %48 = vsyncadd [#allocation4], %s47
      %s50 = sshll.u32 [#allocation7], 4
      %s51 = int_to_ptr.vmem [resolvable:$true] %s50
      %53 = dma.vmem_to_hbm [thread:$0]  %s51, 64, %s2, [#allocation4]
    $region21: #{tpu_custom_call.1} parent=1 // pred_fallthru
      _
    // Predicated region
    $region22: #{tpu_custom_call.1} parent=1 // pred_check
      _
    $region23: #{tpu_custom_call.1} parent=1 // pred_check_branch
      %55 = sbr.rel (0) target = $region25
    $region24: #{tpu_custom_call.1} parent=1 // pred_region
      %56 = dma.done [#allocation4], 64
    $region25: #{tpu_custom_call.1} parent=1 // pred_fallthru
      _
    %57 = vsyncpa [#allocation3], 1
    %58 = vsyncpa [#allocation6], 1
    %59 = vsyncpa [#allocation4], 1

</llo_original>
